<compile_context>
chip_gen: v7x
topology: tpu7x:2x2x1
jax: 0.10.0
libtpu: 0.0.40
codegen_flags: <defaults>
</compile_context>

<pallas_src>
import functools

import jax
import jax.numpy as jnp
from jax import lax
from jax.experimental import pallas as pl
from jax.experimental.pallas import tpu as pltpu


# ----------------------------------------------------------------------------
# Fused kernel: stacked tanh-RNN layers + FC + log_softmax(dim=1)
#
# Ref order (pallas_call convention: inputs..., outputs..., scratch...):
#   x_ref                              : (BT, T, I0)  batch-tile, batch-first
#   refs[3l : 3l+3] for l in range(L)  : w_ih (I, H), w_hh (H, H), b (1, H)
#   refs[3L], refs[3L+1]               : w_fc (H, C), b_fc (1, C)
#   refs[3L+2]                         : out_ref (BT, C)
#   refs[3L+3]                         : xp_sc  (T, BT, H)  hoisted projection
#   refs[3L+4 : 3L+4+num_seq_bufs]     : ping-pong inter-layer seq scratch
# ----------------------------------------------------------------------------
def fused_rnn_fc_kernel(x_ref, *refs, num_layers, num_seq_bufs):
    layer_refs = refs[:3 * num_layers]
    w_fc_ref = refs[3 * num_layers]
    b_fc_ref = refs[3 * num_layers + 1]
    out_ref = refs[3 * num_layers + 2]
    xp_sc = refs[3 * num_layers + 3]
    seq_bufs = refs[3 * num_layers + 4: 3 * num_layers + 4 + num_seq_bufs]

    BT, T, I0 = x_ref.shape
    H = layer_refs[1].shape[0]

    h_last = None
    for l in range(num_layers):
        w_ih = layer_refs[3 * l][...]
        w_hh = layer_refs[3 * l + 1][...]
        b = layer_refs[3 * l + 2][...]

        # ---- Hoisted, non-recurrent input projection: ONE matmul per layer,
        # ---- written time-major into VMEM scratch (no per-step slicing).
        if l == 0:
            x_tbi = jnp.swapaxes(x_ref[...], 0, 1)          # (T, BT, I0), once
            x2d = x_tbi.reshape(T * BT, I0)                  # tile-aligned merge
        else:
            x2d = seq_bufs[(l - 1) % num_seq_bufs][...].reshape(T * BT, H)
        xp2d = jnp.dot(x2d, w_ih, preferred_element_type=jnp.float32) + b
        xp_sc[...] = xp2d.reshape(T, BT, H)                  # (T, BT, H)

        # ---- Serial recurrence over time: fori_loop, cheap xp_sc[t] loads.
        write_seq = (l + 1 < num_layers)
        dst = seq_bufs[l % num_seq_bufs] if write_seq else None

        def step(t, h, _w_hh=w_hh, _dst=dst, _write=write_seq):
            h_new = jnp.tanh(
                xp_sc[t] + jnp.dot(h, _w_hh, preferred_element_type=jnp.float32))
            if _write:
                _dst[t] = h_new
            return h_new

        h_last = lax.fori_loop(0, T, step, jnp.zeros((BT, H), jnp.float32),
                               unroll=min(T, 2))

    # ---- Final Linear + log_softmax(dim=1) on the last time step.
    logits = jnp.dot(h_last, w_fc_ref[...],
                     preferred_element_type=jnp.float32) + b_fc_ref[...]
    m = jnp.max(logits, axis=-1, keepdims=True)
    shifted = logits - m
    lse = jnp.log(jnp.sum(jnp.exp(shifted), axis=-1, keepdims=True))
    out_ref[...] = shifted - lse


def _round_up(a, b):
    return (a + b - 1) // b * b


# ----------------------------------------------------------------------------
# Wrapper: single fused pallas_call with a parallel batch-tile grid.
# ----------------------------------------------------------------------------
def rnn_forward_pallas(x, params):
    B, T, m = x.shape
    layers = params["rnn_layers"]
    num_layers = len(layers)
    H = layers[0][1].shape[0]
    C = params["w_fc"].shape[1]

    # Batch tile: multiple of 8 sublanes; pad batch up to a whole number of tiles.
    BT = min(_round_up(B, 8), 128)
    B_pad = _round_up(B, BT)
    if B_pad != B:
        x = jnp.pad(x, ((0, B_pad - B), (0, 0), (0, 0)))
    grid = (B_pad // BT,)

    flat_weights = []
    in_specs = [pl.BlockSpec((BT, T, m), lambda i: (i, 0, 0))]
    for (w_ih, w_hh, b) in layers:
        flat_weights += [w_ih, w_hh, b]
        in_specs += [
            pl.BlockSpec(w_ih.shape, lambda i: (0, 0)),   # VMEM-resident
            pl.BlockSpec(w_hh.shape, lambda i: (0, 0)),
            pl.BlockSpec(b.shape, lambda i: (0, 0)),
        ]
    in_specs += [
        pl.BlockSpec(params["w_fc"].shape, lambda i: (0, 0)),
        pl.BlockSpec(params["b_fc"].shape, lambda i: (0, 0)),
    ]
    out_specs = pl.BlockSpec((BT, C), lambda i: (i, 0))

    # Scratch: hoisted projection + ping-pong inter-layer sequence buffers.
    num_seq_bufs = 0 if num_layers == 1 else min(num_layers - 1, 2)
    scratch_shapes = [pltpu.VMEM((T, BT, H), jnp.float32)]
    scratch_shapes += [pltpu.VMEM((T, BT, H), jnp.float32)
                       for _ in range(num_seq_bufs)]

    # VMEM budget from the actual resident footprint (+ headroom, v7x-safe cap).
    f32 = 4
    x_blk = BT * T * m * f32
    out_blk = BT * C * f32
    w_bytes = sum(int(w.size) for w in flat_weights) * f32 \
        + int(params["w_fc"].size + params["b_fc"].size) * f32
    sc_bytes = (1 + num_seq_bufs) * T * BT * H * f32
    vmem_needed = 2 * (x_blk + out_blk) + 2 * w_bytes + sc_bytes + (2 << 20)
    vmem_limit = int(min(max(vmem_needed, 16 << 20), 56 << 20))

    out_pad = pl.pallas_call(
        functools.partial(fused_rnn_fc_kernel,
                          num_layers=num_layers, num_seq_bufs=num_seq_bufs),
        out_shape=jax.ShapeDtypeStruct((B_pad, C), jnp.float32),
        grid=grid,
        in_specs=in_specs,
        out_specs=out_specs,
        scratch_shapes=scratch_shapes,
        compiler_params=pltpu.CompilerParams(
            dimension_semantics=("parallel",),
            vmem_limit_bytes=vmem_limit),
    )(x, *flat_weights, params["w_fc"], params["b_fc"])
    return out_pad[:B]


rnn_forward = jax.jit(rnn_forward_pallas)


# ----------------------------------------------------------------------------
# Parameters (PyTorch nn.RNN / nn.Linear layout, weights pre-transposed)
# ----------------------------------------------------------------------------
def init_params(key, m, hidden_size, num_layers, num_categories):
    params = {"rnn_layers": []}
    for layer in range(num_layers):
        in_size = m if layer == 0 else hidden_size
        key, k1, k2, k3, k4 = jax.random.split(key, 5)
        bound = 1.0 / jnp.sqrt(hidden_size)
        w_ih = jax.random.uniform(k1, (in_size, hidden_size), jnp.float32,
                                  -bound, bound)
        w_hh = jax.random.uniform(k2, (hidden_size, hidden_size), jnp.float32,
                                  -bound, bound)
        b_ih = jax.random.uniform(k3, (1, hidden_size), jnp.float32,
                                  -bound, bound)
        b_hh = jax.random.uniform(k4, (1, hidden_size), jnp.float32,
                                  -bound, bound)
        params["rnn_layers"].append((w_ih, w_hh, b_ih + b_hh))
    key, k1, k2 = jax.random.split(key, 3)
    fbound = 1.0 / jnp.sqrt(hidden_size)
    params["w_fc"] = jax.random.uniform(
        k1, (hidden_size, num_categories), jnp.float32, -fbound, fbound)
    params["b_fc"] = jax.random.uniform(
        k2, (1, num_categories), jnp.float32, -fbound, fbound)
    return params


# ----------------------------------------------------------------------------
# Pure-JAX reference (mirrors nn.RNN(tanh) + fc + log_softmax)
# ----------------------------------------------------------------------------
def rnn_forward_ref(x, params):
    B, T, _ = x.shape
    h_seq = jnp.transpose(x, (1, 0, 2))                 # (T, B, I)
    for (w_ih, w_hh, b) in params["rnn_layers"]:
        H = w_hh.shape[0]
        h = jnp.zeros((B, H), jnp.float32)
        outs = []
        for t in range(T):
            h = jnp.tanh(h_seq[t] @ w_ih + h @ w_hh + b)
            outs.append(h)
        h_seq = jnp.stack(outs, axis=0)
    logits = h_seq[-1] @ params["w_fc"] + params["b_fc"]
    return jax.nn.log_softmax(logits, axis=-1)


if __name__ == "__main__":
    # net_params: m=16, rank (hidden)=32, amount_of_divisions=2 (= num_layers
    # = sequence length), batch_size=2, amount_of_categories=10
    batch = 2
    m = 16
    hidden = 32
    divisions = 2
    categories = 10

    key = jax.random.PRNGKey(0)
    key, kx = jax.random.split(key)
    # x: already feature-mapped / division-grouped tensor (B, divisions, m)
    x = jax.random.normal(kx, (batch, divisions, m), jnp.float32)

    params = init_params(key, m, hidden, divisions, categories)

    out = jax.block_until_ready(rnn_forward(x, params))
    assert out.shape == (batch, categories)
    # log_softmax rows should sum to ~1 in prob space
    assert jnp.allclose(jnp.sum(jnp.exp(out), axis=1), 1.0, atol=1e-4)
    # match pure-JAX reference
    ref = rnn_forward_ref(x, params)
    assert jnp.allclose(out, ref, rtol=1e-3, atol=1e-3)
    print("KERNEL_OK")
</pallas_src>

<mosaic_0001>
module attributes {stable_mosaic.version = 11 : i64} {
  func.func @fused_rnn_fc_kernel(%arg0: i32, %arg1: memref<8x2x16xf32, #tpu.memory_space<vmem>>, %arg2: memref<16x32xf32, #tpu.memory_space<vmem>>, %arg3: memref<32x32xf32, #tpu.memory_space<vmem>>, %arg4: memref<1x32xf32, #tpu.memory_space<vmem>>, %arg5: memref<32x32xf32, #tpu.memory_space<vmem>>, %arg6: memref<32x32xf32, #tpu.memory_space<vmem>>, %arg7: memref<1x32xf32, #tpu.memory_space<vmem>>, %arg8: memref<32x10xf32, #tpu.memory_space<vmem>>, %arg9: memref<1x10xf32, #tpu.memory_space<vmem>>, %arg10: memref<8x10xf32, #tpu.memory_space<vmem>>, %arg11: memref<2x8x32xf32, #tpu.memory_space<vmem>>, %arg12: memref<2x8x32xf32, #tpu.memory_space<vmem>>) attributes {dimension_semantics = [#tpu.dimension_semantics<parallel>], iteration_bounds = array<i64: 1>, scalar_prefetch = 0 : i64, scratch_operands = 2 : i64, tpu.core_type = #tpu.core_type<tc>, window_params = [{transform_indices = @transform_0, window_bounds = array<i64: 8, 2, 16>}, {pipeline_mode = #tpu.pipeline_mode<synchronous>, transform_indices = @transform_1, window_bounds = array<i64: 16, 32>}, {pipeline_mode = #tpu.pipeline_mode<synchronous>, transform_indices = @transform_2, window_bounds = array<i64: 32, 32>}, {pipeline_mode = #tpu.pipeline_mode<synchronous>, transform_indices = @transform_3, window_bounds = array<i64: 1, 32>}, {pipeline_mode = #tpu.pipeline_mode<synchronous>, transform_indices = @transform_4, window_bounds = array<i64: 32, 32>}, {pipeline_mode = #tpu.pipeline_mode<synchronous>, transform_indices = @transform_5, window_bounds = array<i64: 32, 32>}, {pipeline_mode = #tpu.pipeline_mode<synchronous>, transform_indices = @transform_6, window_bounds = array<i64: 1, 32>}, {pipeline_mode = #tpu.pipeline_mode<synchronous>, transform_indices = @transform_7, window_bounds = array<i64: 32, 10>}, {pipeline_mode = #tpu.pipeline_mode<synchronous>, transform_indices = @transform_8, window_bounds = array<i64: 1, 10>}, {transform_indices = @transform_9, window_bounds = array<i64: 8, 10>}]} {
    %c0 = arith.constant 0 : index
    %c0_0 = arith.constant 0 : index
    %0 = vector.load %arg2[%c0, %c0_0] : memref<16x32xf32, #tpu.memory_space<vmem>>, vector<16x32xf32>
    %c0_1 = arith.constant 0 : index
    %c0_2 = arith.constant 0 : index
    %1 = vector.load %arg3[%c0_1, %c0_2] : memref<32x32xf32, #tpu.memory_space<vmem>>, vector<32x32xf32>
    %c0_3 = arith.constant 0 : index
    %c0_4 = arith.constant 0 : index
    %2 = vector.load %arg4[%c0_3, %c0_4] : memref<1x32xf32, #tpu.memory_space<vmem>>, vector<1x32xf32>
    %c0_5 = arith.constant 0 : index
    %c0_6 = arith.constant 0 : index
    %c0_7 = arith.constant 0 : index
    %3 = vector.load %arg1[%c0_5, %c0_6, %c0_7] : memref<8x2x16xf32, #tpu.memory_space<vmem>>, vector<8x2x16xf32>
    %4 = tpu.transpose %3, [1, 0, 2] : vector<8x2x16xf32> -> vector<2x8x16xf32>
    %5 = vector.shape_cast %4 : vector<2x8x16xf32> to vector<16x16xf32>
    %cst = arith.constant dense<0.000000e+00> : vector<16x32xf32>
    %6 = tpu.matmul %5, %0, %cst {dimension_numbers = #tpu.dot_dimension_numbers<[1], [0], [0], [1], [0, 0, 1, 1], [], []>} : vector<16x16xf32>, vector<16x32xf32>, vector<16x32xf32> -> vector<16x32xf32>
    %7 = vector.broadcast %2 : vector<1x32xf32> to vector<16x32xf32>
    %8 = arith.addf %6, %7 : vector<16x32xf32>
    %9 = vector.shape_cast %8 : vector<16x32xf32> to vector<2x8x32xf32>
    %c0_8 = arith.constant 0 : index
    %c0_9 = arith.constant 0 : index
    %c0_10 = arith.constant 0 : index
    %10 = vector.load %arg11[%c0_8, %c0_9, %c0_10] : memref<2x8x32xf32, #tpu.memory_space<vmem>>, vector<2x8x32xf32>
    tpu.vector_store %arg11[%c0_8, %c0_9, %c0_10], %9 {strides = array<i32>} : memref<2x8x32xf32, #tpu.memory_space<vmem>>, vector<2x8x32xf32>,
    %cst_11 = arith.constant 0.000000e+00 : f32
    %11 = vector.broadcast %cst_11 : f32 to vector<8x32xf32>
    %c0_i32 = arith.constant 0 : i32
    %12 = arith.index_cast %c0_i32 : i32 to index
    %c0_12 = arith.constant 0 : index
    %c0_13 = arith.constant 0 : index
    %13 = vector.load %arg11[%12, %c0_12, %c0_13] : memref<2x8x32xf32, #tpu.memory_space<vmem>>, vector<1x8x32xf32>
    %14 = vector.shape_cast %13 : vector<1x8x32xf32> to vector<8x32xf32>
    %cst_14 = arith.constant dense<0.000000e+00> : vector<8x32xf32>
    %15 = tpu.matmul %11, %1, %cst_14 {dimension_numbers = #tpu.dot_dimension_numbers<[1], [0], [0], [1], [0, 0, 1, 1], [], []>} : vector<8x32xf32>, vector<32x32xf32>, vector<8x32xf32> -> vector<8x32xf32>
    %16 = arith.addf %14, %15 : vector<8x32xf32>
    %17 = math.tanh %16 : vector<8x32xf32>
    %18 = arith.index_cast %c0_i32 : i32 to index
    %c0_15 = arith.constant 0 : index
    %c0_16 = arith.constant 0 : index
    %19 = vector.load %arg12[%18, %c0_15, %c0_16] : memref<2x8x32xf32, #tpu.memory_space<vmem>>, vector<1x8x32xf32>
    %20 = vector.shape_cast %19 : vector<1x8x32xf32> to vector<8x32xf32>
    %21 = vector.shape_cast %17 : vector<8x32xf32> to vector<1x8x32xf32>
    tpu.vector_store %arg12[%18, %c0_15, %c0_16], %21 {strides = array<i32>} : memref<2x8x32xf32, #tpu.memory_space<vmem>>, vector<1x8x32xf32>,
    %c1_i32 = arith.constant 1 : i32
    %22 = arith.index_cast %c1_i32 : i32 to index
    %c0_17 = arith.constant 0 : index
    %c0_18 = arith.constant 0 : index
    %23 = vector.load %arg11[%22, %c0_17, %c0_18] : memref<2x8x32xf32, #tpu.memory_space<vmem>>, vector<1x8x32xf32>
    %24 = vector.shape_cast %23 : vector<1x8x32xf32> to vector<8x32xf32>
    %cst_19 = arith.constant dense<0.000000e+00> : vector<8x32xf32>
    %25 = tpu.matmul %17, %1, %cst_19 {dimension_numbers = #tpu.dot_dimension_numbers<[1], [0], [0], [1], [0, 0, 1, 1], [], []>} : vector<8x32xf32>, vector<32x32xf32>, vector<8x32xf32> -> vector<8x32xf32>
    %26 = arith.addf %24, %25 : vector<8x32xf32>
    %27 = math.tanh %26 : vector<8x32xf32>
    %28 = arith.index_cast %c1_i32 : i32 to index
    %c0_20 = arith.constant 0 : index
    %c0_21 = arith.constant 0 : index
    %29 = vector.load %arg12[%28, %c0_20, %c0_21] : memref<2x8x32xf32, #tpu.memory_space<vmem>>, vector<1x8x32xf32>
    %30 = vector.shape_cast %29 : vector<1x8x32xf32> to vector<8x32xf32>
    %31 = vector.shape_cast %27 : vector<8x32xf32> to vector<1x8x32xf32>
    tpu.vector_store %arg12[%28, %c0_20, %c0_21], %31 {strides = array<i32>} : memref<2x8x32xf32, #tpu.memory_space<vmem>>, vector<1x8x32xf32>,
    %c2_i32 = arith.constant 2 : i32
    %c0_22 = arith.constant 0 : index
    %c0_23 = arith.constant 0 : index
    %32 = vector.load %arg5[%c0_22, %c0_23] : memref<32x32xf32, #tpu.memory_space<vmem>>, vector<32x32xf32>
    %c0_24 = arith.constant 0 : index
    %c0_25 = arith.constant 0 : index
    %33 = vector.load %arg6[%c0_24, %c0_25] : memref<32x32xf32, #tpu.memory_space<vmem>>, vector<32x32xf32>
    %c0_26 = arith.constant 0 : index
    %c0_27 = arith.constant 0 : index
    %34 = vector.load %arg7[%c0_26, %c0_27] : memref<1x32xf32, #tpu.memory_space<vmem>>, vector<1x32xf32>
    %c0_28 = arith.constant 0 : index
    %c0_29 = arith.constant 0 : index
    %c0_30 = arith.constant 0 : index
    %35 = vector.load %arg12[%c0_28, %c0_29, %c0_30] : memref<2x8x32xf32, #tpu.memory_space<vmem>>, vector<2x8x32xf32>
    %36 = vector.shape_cast %35 : vector<2x8x32xf32> to vector<16x32xf32>
    %cst_31 = arith.constant dense<0.000000e+00> : vector<16x32xf32>
    %37 = tpu.matmul %36, %32, %cst_31 {dimension_numbers = #tpu.dot_dimension_numbers<[1], [0], [0], [1], [0, 0, 1, 1], [], []>} : vector<16x32xf32>, vector<32x32xf32>, vector<16x32xf32> -> vector<16x32xf32>
    %38 = vector.broadcast %34 : vector<1x32xf32> to vector<16x32xf32>
    %39 = arith.addf %37, %38 : vector<16x32xf32>
    %40 = vector.shape_cast %39 : vector<16x32xf32> to vector<2x8x32xf32>
    %c0_32 = arith.constant 0 : index
    %c0_33 = arith.constant 0 : index
    %c0_34 = arith.constant 0 : index
    %41 = vector.load %arg11[%c0_32, %c0_33, %c0_34] : memref<2x8x32xf32, #tpu.memory_space<vmem>>, vector<2x8x32xf32>
    tpu.vector_store %arg11[%c0_32, %c0_33, %c0_34], %40 {strides = array<i32>} : memref<2x8x32xf32, #tpu.memory_space<vmem>>, vector<2x8x32xf32>,
    %cst_35 = arith.constant 0.000000e+00 : f32
    %42 = vector.broadcast %cst_35 : f32 to vector<8x32xf32>
    %c0_i32_36 = arith.constant 0 : i32
    %43 = arith.index_cast %c0_i32_36 : i32 to index
    %c0_37 = arith.constant 0 : index
    %c0_38 = arith.constant 0 : index
    %44 = vector.load %arg11[%43, %c0_37, %c0_38] : memref<2x8x32xf32, #tpu.memory_space<vmem>>, vector<1x8x32xf32>
    %45 = vector.shape_cast %44 : vector<1x8x32xf32> to vector<8x32xf32>
    %cst_39 = arith.constant dense<0.000000e+00> : vector<8x32xf32>
    %46 = tpu.matmul %42, %33, %cst_39 {dimension_numbers = #tpu.dot_dimension_numbers<[1], [0], [0], [1], [0, 0, 1, 1], [], []>} : vector<8x32xf32>, vector<32x32xf32>, vector<8x32xf32> -> vector<8x32xf32>
    %47 = arith.addf %45, %46 : vector<8x32xf32>
    %48 = math.tanh %47 : vector<8x32xf32>
    %c1_i32_40 = arith.constant 1 : i32
    %49 = arith.index_cast %c1_i32_40 : i32 to index
    %c0_41 = arith.constant 0 : index
    %c0_42 = arith.constant 0 : index
    %50 = vector.load %arg11[%49, %c0_41, %c0_42] : memref<2x8x32xf32, #tpu.memory_space<vmem>>, vector<1x8x32xf32>
    %51 = vector.shape_cast %50 : vector<1x8x32xf32> to vector<8x32xf32>
    %cst_43 = arith.constant dense<0.000000e+00> : vector<8x32xf32>
    %52 = tpu.matmul %48, %33, %cst_43 {dimension_numbers = #tpu.dot_dimension_numbers<[1], [0], [0], [1], [0, 0, 1, 1], [], []>} : vector<8x32xf32>, vector<32x32xf32>, vector<8x32xf32> -> vector<8x32xf32>
    %53 = arith.addf %51, %52 : vector<8x32xf32>
    %54 = math.tanh %53 : vector<8x32xf32>
    %c2_i32_44 = arith.constant 2 : i32
    %c0_45 = arith.constant 0 : index
    %c0_46 = arith.constant 0 : index
    %55 = vector.load %arg8[%c0_45, %c0_46] : memref<32x10xf32, #tpu.memory_space<vmem>>, vector<32x10xf32>
    %cst_47 = arith.constant dense<0.000000e+00> : vector<8x10xf32>
    %56 = tpu.matmul %54, %55, %cst_47 {dimension_numbers = #tpu.dot_dimension_numbers<[1], [0], [0], [1], [0, 0, 1, 1], [], []>} : vector<8x32xf32>, vector<32x10xf32>, vector<8x10xf32> -> vector<8x10xf32>
    %c0_48 = arith.constant 0 : index
    %c0_49 = arith.constant 0 : index
    %57 = vector.load %arg9[%c0_48, %c0_49] : memref<1x10xf32, #tpu.memory_space<vmem>>, vector<1x10xf32>
    %58 = vector.broadcast %57 : vector<1x10xf32> to vector<8x10xf32>
    %59 = arith.addf %56, %58 : vector<8x10xf32>
    %cst_50 = arith.constant dense<0xFF800000> : vector<8xf32>
    %60 = vector.multi_reduction <maximumf>, %59, %cst_50 [1] : vector<8x10xf32> to vector<8xf32>
    %61 = vector.shape_cast %60 : vector<8xf32> to vector<8x1xf32>
    %62 = vector.broadcast %61 : vector<8x1xf32> to vector<8x10xf32>
    %63 = arith.subf %59, %62 : vector<8x10xf32>
    %64 = math.exp %63 : vector<8x10xf32>
    %cst_51 = arith.constant dense<0.000000e+00> : vector<8xf32>
    %65 = vector.multi_reduction <add>, %64, %cst_51 [1] : vector<8x10xf32> to vector<8xf32>
    %66 = vector.shape_cast %65 : vector<8xf32> to vector<8x1xf32>
    %67 = math.log %66 : vector<8x1xf32>
    %68 = vector.broadcast %67 : vector<8x1xf32> to vector<8x10xf32>
    %69 = arith.subf %63, %68 : vector<8x10xf32>
    %c0_52 = arith.constant 0 : index
    %c0_53 = arith.constant 0 : index
    %70 = vector.load %arg10[%c0_52, %c0_53] : memref<8x10xf32, #tpu.memory_space<vmem>>, vector<8x10xf32>
    tpu.vector_store %arg10[%c0_52, %c0_53], %69 {strides = array<i32>} : memref<8x10xf32, #tpu.memory_space<vmem>>, vector<8x10xf32>,
    return
  }
  func.func @transform_0(%arg0: i32) -> (i32, i32, i32) {
    %c0_i32 = arith.constant 0 : i32
    %c0_i32_0 = arith.constant 0 : i32
    %c0_i32_1 = arith.constant 0 : i32
    return %arg0, %c0_i32, %c0_i32_0 : i32, i32, i32
  }
  func.func @transform_1(%arg0: i32) -> (i32, i32) {
    %c0_i32 = arith.constant 0 : i32
    %c0_i32_0 = arith.constant 0 : i32
    %c0_i32_1 = arith.constant 0 : i32
    return %c0_i32, %c0_i32_0 : i32, i32
  }
  func.func @transform_2(%arg0: i32) -> (i32, i32) {
    %c0_i32 = arith.constant 0 : i32
    %c0_i32_0 = arith.constant 0 : i32
    %c0_i32_1 = arith.constant 0 : i32
    return %c0_i32, %c0_i32_0 : i32, i32
  }
  func.func @transform_3(%arg0: i32) -> (i32, i32) {
    %c0_i32 = arith.constant 0 : i32
    %c0_i32_0 = arith.constant 0 : i32
    %c0_i32_1 = arith.constant 0 : i32
    return %c0_i32, %c0_i32_0 : i32, i32
  }
  func.func @transform_4(%arg0: i32) -> (i32, i32) {
    %c0_i32 = arith.constant 0 : i32
    %c0_i32_0 = arith.constant 0 : i32
    %c0_i32_1 = arith.constant 0 : i32
    return %c0_i32, %c0_i32_0 : i32, i32
  }
  func.func @transform_5(%arg0: i32) -> (i32, i32) {
    %c0_i32 = arith.constant 0 : i32
    %c0_i32_0 = arith.constant 0 : i32
    %c0_i32_1 = arith.constant 0 : i32
    return %c0_i32, %c0_i32_0 : i32, i32
  }
  func.func @transform_6(%arg0: i32) -> (i32, i32) {
    %c0_i32 = arith.constant 0 : i32
    %c0_i32_0 = arith.constant 0 : i32
    %c0_i32_1 = arith.constant 0 : i32
    return %c0_i32, %c0_i32_0 : i32, i32
  }
  func.func @transform_7(%arg0: i32) -> (i32, i32) {
    %c0_i32 = arith.constant 0 : i32
    %c0_i32_0 = arith.constant 0 : i32
    %c0_i32_1 = arith.constant 0 : i32
    return %c0_i32, %c0_i32_0 : i32, i32
  }
  func.func @transform_8(%arg0: i32) -> (i32, i32) {
    %c0_i32 = arith.constant 0 : i32
    %c0_i32_0 = arith.constant 0 : i32
    %c0_i32_1 = arith.constant 0 : i32
    return %c0_i32, %c0_i32_0 : i32, i32
  }
  func.func @transform_9(%arg0: i32) -> (i32, i32) {
    %c0_i32 = arith.constant 0 : i32
    %c0_i32_0 = arith.constant 0 : i32
    return %arg0, %c0_i32 : i32, i32
  }
}

</mosaic_0001>

<llo_original>
// kernel: rnn_forward_pallas.1
$region0: #{rnn_forward_pallas.1}
  #allocation0 [shape = 'u32[]', space=smem, size = 0x4, offset = 0x4, fixed_abs, tag = 'smem constant byte address 0x4 - core index']
  #allocation1 [shape = 'u32[144,128]{1,0:T(1,128)}', space=vmem, size = 0x12000, scoped, tag = 'internal scratch']
  #allocation2 [shape = 'f32[2,8,32]{2,1,0:T(8,128)}', space=vmem, size = 0x2000, scoped, tag = 'scratch operand']
  #allocation3 [shape = 'f32[2,8,32]{2,1,0:T(8,128)}', space=vmem, size = 0x2000, scoped, tag = 'scratch operand']
  %s0 = inlined_call_operand.vmem [shape: f32[8,2,16], index: 0, kind: input, shape index: {}]
  %s1 = inlined_call_operand.hbm [shape: f32[16,32], index: 1, kind: input, shape index: {}]
  %s2 = inlined_call_operand.vmem [shape: f32[32,32], index: 2, kind: input, shape index: {}]
  %s3 = inlined_call_operand.vmem [shape: f32[1,32], index: 3, kind: input, shape index: {}]
  %s4 = inlined_call_operand.vmem [shape: f32[32,32], index: 4, kind: input, shape index: {}]
  %s5 = inlined_call_operand.hbm [shape: f32[32,32], index: 5, kind: input, shape index: {}]
  %s6 = inlined_call_operand.vmem [shape: f32[1,32], index: 6, kind: input, shape index: {}]
  %s7 = inlined_call_operand.vmem [shape: f32[32,10], index: 7, kind: input, shape index: {}]
  %s8 = inlined_call_operand.hbm [shape: f32[1,10], index: 8, kind: input, shape index: {}]
  %s9 = inlined_call_operand.vmem [shape: f32[8,10], index: 9, kind: output, shape index: {}]
  %s10 = sld [smem:[#allocation0]]
  $region58: #{rnn_forward_pallas.1} parent=0
    _
  %s12 = ssub.s32 1, %s10
  %s13 = scalar_select 0, %s12, %s10
  $region1: #{rnn_forward_pallas.1} parent=0
    #allocation4 [shape = 'u8[8192]{0}', space=vmem, size = 0x2000, scoped, tag = 'input window, operand 1, single buffered']
    #allocation5 [shape = 's32[1]{0}', space=sflag, size = 0x4, scoped, tag = 'scoped memory for rnn_forward_pallas.1']
    #allocation6 [shape = 'u8[16384]{0}', space=vmem, size = 0x4000, scoped, tag = 'input window, operand 5, single buffered']
    #allocation7 [shape = 's32[1]{0}', space=sflag, size = 0x4, scoped, tag = 'scoped memory for rnn_forward_pallas.1']
    #allocation8 [shape = 'u8[512]{0}', space=vmem, size = 0x400, scoped, tag = 'input window, operand 8, single buffered']
    %14 = vsyncpa [#allocation5], 0
    %15 = vsyncpa [#allocation7], 0
    // Predicated region
    $region2: #{rnn_forward_pallas.1} parent=1 // pred_check
      _
    $region3: #{rnn_forward_pallas.1} parent=1 // pred_check_branch
      %17 = sbr.rel (0) target = $region5
    $region4: #{rnn_forward_pallas.1} parent=1 // pred_region
      _
    $region5: #{rnn_forward_pallas.1} parent=1 // pred_fallthru
      _
    // Predicated region
    $region6: #{rnn_forward_pallas.1} parent=1 // pred_check
      _
    $region7: #{rnn_forward_pallas.1} parent=1 // pred_check_branch
      %19 = sbr.rel (0) target = $region9
    $region8: #{rnn_forward_pallas.1} parent=1 // pred_region
      %s21 = ssub.s32 256, 256
      %22 = vsyncadd [#allocation5], %s21
      %s23 = sshll.u32 [#allocation4], 4
      %s24 = int_to_ptr.vmem [resolvable:$true] %s23
      %29 = dma.hbm_to_vmem [thread:$0]  %s1, 256, %s24, [#allocation5], 128, 128, 8
    $region9: #{rnn_forward_pallas.1} parent=1 // pred_fallthru
      _
    // Predicated region
    $region10: #{rnn_forward_pallas.1} parent=1 // pred_check
      _
    $region11: #{rnn_forward_pallas.1} parent=1 // pred_check_branch
      %31 = sbr.rel (0) target = $region13
    $region12: #{rnn_forward_pallas.1} parent=1 // pred_region
      _
    $region13: #{rnn_forward_pallas.1} parent=1 // pred_fallthru
      _
    // Predicated region
    $region14: #{rnn_forward_pallas.1} parent=1 // pred_check
      _
    $region15: #{rnn_forward_pallas.1} parent=1 // pred_check_branch
      %33 = sbr.rel (0) target = $region17
    $region16: #{rnn_forward_pallas.1} parent=1 // pred_region
      _
    $region17: #{rnn_forward_pallas.1} parent=1 // pred_fallthru
      _
    // Predicated region
    $region18: #{rnn_forward_pallas.1} parent=1 // pred_check
      _
    $region19: #{rnn_forward_pallas.1} parent=1 // pred_check_branch
      %35 = sbr.rel (0) target = $region21
    $region20: #{rnn_forward_pallas.1} parent=1 // pred_region
      _
    $region21: #{rnn_forward_pallas.1} parent=1 // pred_fallthru
      _
    // Predicated region
    $region22: #{rnn_forward_pallas.1} parent=1 // pred_check
      _
    $region23: #{rnn_forward_pallas.1} parent=1 // pred_check_branch
      %37 = sbr.rel (0) target = $region25
    $region24: #{rnn_forward_pallas.1} parent=1 // pred_region
      %s39 = ssub.s32 512, 512
      %40 = vsyncadd [#allocation7], %s39
      %s41 = sshll.u32 [#allocation6], 4
      %s42 = int_to_ptr.vmem [resolvable:$true] %s41
      %47 = dma.hbm_to_vmem [thread:$0]  %s5, 512, %s42, [#allocation7], 128, 128, 8
    $region25: #{rnn_forward_pallas.1} parent=1 // pred_fallthru
      _
    // Predicated region
    $region26: #{rnn_forward_pallas.1} parent=1 // pred_check
      _
    $region27: #{rnn_forward_pallas.1} parent=1 // pred_check_branch
      %49 = sbr.rel (0) target = $region29
    $region28: #{rnn_forward_pallas.1} parent=1 // pred_region
      _
    $region29: #{rnn_forward_pallas.1} parent=1 // pred_fallthru
      _
    // Predicated region
    $region30: #{rnn_forward_pallas.1} parent=1 // pred_check
      _
    $region31: #{rnn_forward_pallas.1} parent=1 // pred_check_branch
      %51 = sbr.rel (0) target = $region33
    $region32: #{rnn_forward_pallas.1} parent=1 // pred_region
      _
    $region33: #{rnn_forward_pallas.1} parent=1 // pred_fallthru
      _
    // Predicated region
    $region34: #{rnn_forward_pallas.1} parent=1 // pred_check
      _
    $region35: #{rnn_forward_pallas.1} parent=1 // pred_check_branch
      %53 = sbr.rel (0) target = $region37
    $region36: #{rnn_forward_pallas.1} parent=1 // pred_region
      %s55 = ssub.s32 16, 16
      %56 = vsyncadd [#allocation7], %s55
      %s58 = sshll.u32 [#allocation8], 4
      %s59 = int_to_ptr.vmem [resolvable:$true] %s58
      %61 = dma.hbm_to_vmem [thread:$0]  %s8, 16, %s59, [#allocation7]
    $region37: #{rnn_forward_pallas.1} parent=1 // pred_fallthru
      _
    // Predicated region
    $region38: #{rnn_forward_pallas.1} parent=1 // pred_check
      _
    $region39: #{rnn_forward_pallas.1} parent=1 // pred_check_branch
      %63 = sbr.rel (0) target = $region41
    $region40: #{rnn_forward_pallas.1} parent=1 // pred_region
      %64 = dma.done [#allocation5], 256
    $region41: #{rnn_forward_pallas.1} parent=1 // pred_fallthru
      _
    // Predicated region
    $region42: #{rnn_forward_pallas.1} parent=1 // pred_check
      _
    $region43: #{rnn_forward_pallas.1} parent=1 // pred_check_branch
      %66 = sbr.rel (0) target = $region45
    $region44: #{rnn_forward_pallas.1} parent=1 // pred_region
      %67 = dma.done [#allocation7], 512
    $region45: #{rnn_forward_pallas.1} parent=1 // pred_fallthru
      _
    // Predicated region
    $region46: #{rnn_forward_pallas.1} parent=1 // pred_check
      _
    $region47: #{rnn_forward_pallas.1} parent=1 // pred_check_branch
      %69 = sbr.rel (0) target = $region49
    $region48: #{rnn_forward_pallas.1} parent=1 // pred_region
      %70 = dma.done [#allocation7], 16
    $region49: #{rnn_forward_pallas.1} parent=1 // pred_fallthru
      _
    %v71 = vld [vmem:[#allocation4] sm:$0xff]
    %v72 = vld [vmem:[#allocation4 + $0x8] sm:$0xff]
    %v73 = vld [vmem:[%s2] sm:$0xff]
    %v74 = vld [vmem:[%s2 + $0x8] sm:$0xff]
    %v75 = vld [vmem:[%s2 + $0x10] sm:$0xff]
    %v76 = vld [vmem:[%s2 + $0x18] sm:$0xff]
    %v77 = vld [vmem:[%s3] sm:$0x1]
    %v78 = vld [vmem:[%s0] sm:$0x3]
    %v79 = vld [vmem:[%s0 + $0x2] sm:$0x3]
    %v80 = vld [vmem:[%s0 + $0x4] sm:$0x3]
    %v81 = vld [vmem:[%s0 + $0x6] sm:$0x3]
    %v82 = vld [vmem:[%s0 + $0x8] sm:$0x3]
    %v83 = vld [vmem:[%s0 + $0xa] sm:$0x3]
    %v84 = vld [vmem:[%s0 + $0xc] sm:$0x3]
    %v85 = vld [vmem:[%s0 + $0xe] sm:$0x3]
    %v86 = vcombine.low %v78, %v80
    %v88 = vunpack.c.l.s4 1983009808
    %v89 = vunpack.c.0.s8 %v88
    %v90 = vlaneseq
    %v91 = vshrl.u32 %v90, 7
    %v92 = vsub.s32 %v89, %v91
    %v93 = vrot.slane %v86, %v92
    %v94 = vcombine.low %v79, %v81
    %v96 = vunpack.c.l.s4 1983009808
    %v97 = vunpack.c.0.s8 %v96
    %v98 = vlaneseq
    %v99 = vshrl.u32 %v98, 7
    %v100 = vsub.s32 %v97, %v99
    %v101 = vrot.slane %v94, %v100
    %v102 = vcombine.low %v82, %v84
    %v104 = vunpack.c.l.s4 1983009808
    %v105 = vunpack.c.0.s8 %v104
    %v106 = vlaneseq
    %v107 = vshrl.u32 %v106, 7
    %v108 = vsub.s32 %v105, %v107
    %v109 = vrot.slane %v102, %v108
    %v110 = vcombine.low %v83, %v85
    %v112 = vunpack.c.l.s4 1983009808
    %v113 = vunpack.c.0.s8 %v112
    %v114 = vlaneseq
    %v115 = vshrl.u32 %v114, 7
    %v116 = vsub.s32 %v113, %v115
    %v117 = vrot.slane %v110, %v116
    %v118 = vcombine.low %v93, %v101
    %v120 = vunpack.c.l.s4 1934713408
    %v121 = vunpack.c.0.s8 %v120
    %v122 = vlaneseq
    %v123 = vshrl.u32 %v122, 7
    %v124 = vsub.s32 %v121, %v123
    %v125 = vrot.slane %v118, %v124
    %v126 = vcombine.low %v109, %v117
    %v128 = vunpack.c.l.s4 1934713408
    %v129 = vunpack.c.0.s8 %v128
    %v130 = vlaneseq
    %v131 = vshrl.u32 %v130, 7
    %v132 = vsub.s32 %v129, %v131
    %v133 = vrot.slane %v126, %v132
    %v134 = vcombine.low %v125, %v133
    %v135 = vcombine.high %v125, %v133
    %v137 = vlaneseq
    %v138 = vshrl.u32 %v137, 7
    %v139 = vsub.s32 0, %v138
    %v140 = vrot.slane %v77, %v139
    %vm142 = vcmask 130048
    %v144 = vsel %vm142, %v134, 0
    %v147 = vsel %vm142, %v135, 0
    %149 = vmatprep.subr.mxu0 0.0
    %150 = vmatpush1.msra.mxu0 %v71
    %151 = vmatprep.subr.mxu0 0.0
    %152 = vmatpush1.msra.mxu0 %v72
    %153 = vmatprep.subr.mxu0 0.0
    %154 = vmatpush1.msra.mxu0 0.0
    %155 = vmatprep.subr.mxu0 0.0
    %156 = vmatpush1.msra.mxu0 0.0
    %157 = vmatprep.subr.mxu0 0.0
    %158 = vmatpush1.msra.mxu0 0.0
    %159 = vmatprep.subr.mxu0 0.0
    %160 = vmatpush1.msra.mxu0 0.0
    %161 = vmatprep.subr.mxu0 0.0
    %162 = vmatpush1.msra.mxu0 0.0
    %163 = vmatprep.subr.mxu0 0.0
    %164 = vmatpush1.msra.mxu0 0.0
    %165 = vmatprep.subr.mxu0 0.0
    %166 = vmatpush1.msra.mxu0 0.0
    %167 = vmatprep.subr.mxu0 0.0
    %168 = vmatpush1.msra.mxu0 0.0
    %169 = vmatprep.subr.mxu0 0.0
    %170 = vmatpush1.msra.mxu0 0.0
    %171 = vmatprep.subr.mxu0 0.0
    %172 = vmatpush1.msra.mxu0 0.0
    %173 = vmatprep.subr.mxu0 0.0
    %174 = vmatpush1.msra.mxu0 0.0
    %175 = vmatprep.subr.mxu0 0.0
    %176 = vmatpush1.msra.mxu0 0.0
    %177 = vmatprep.subr.mxu0 0.0
    %178 = vmatpush1.msra.mxu0 0.0
    %179 = vmatprep.subr.mxu0 0.0
    %180 = vmatpush1.msra.mxu0 0.0
    %181 = vmatprep.subr.mxu0 0.0
    %182 = vmatpush1.msra.mxu0 0.0
    %183 = vmatprep.subr.mxu0 0.0
    %184 = vmatpush1.msra.mxu0 0.0
    %185 = vmatprep.subr.mxu0 0.0
    %186 = vmatpush1.msra.mxu0 0.0
    %187 = vmatprep.subr.mxu0 0.0
    %188 = vmatpush1.msra.mxu0 0.0
    %189 = vmatprep.subr.mxu0 0.0
    %190 = vmatpush1.msra.mxu0 0.0
    %191 = vmatprep.subr.mxu0 0.0
    %192 = vmatpush1.msra.mxu0 0.0
    %193 = vmatprep.subr.mxu0 0.0
    %194 = vmatpush1.msra.mxu0 0.0
    %195 = vmatprep.subr.mxu0 0.0
    %196 = vmatpush1.msra.mxu0 0.0
    %197 = vmatprep.subr.mxu0 0.0
    %198 = vmatpush1.msra.mxu0 0.0
    %199 = vmatprep.subr.mxu0 0.0
    %200 = vmatpush1.msra.mxu0 0.0
    %201 = vmatprep.subr.mxu0 0.0
    %202 = vmatpush1.msra.mxu0 0.0
    %203 = vmatprep.subr.mxu0 0.0
    %204 = vmatpush1.msra.mxu0 0.0
    %205 = vmatprep.subr.mxu0 0.0
    %206 = vmatpush1.msra.mxu0 0.0
    %207 = vmatprep.subr.mxu0 0.0
    %208 = vmatpush1.msra.mxu0 0.0
    %209 = vmatprep.subr.mxu0 0.0
    %210 = vmatpush1.msra.mxu0 0.0
    %211 = vmatprep.subr.mxu0 0.0
    %212 = vmatpush1.msra.mxu0 0.0
    %213 = vmatprep.mubr.f32.mxu0 0.0
    %214 = vmatmul.mubr.f32.gmra.mrb[0].mxu0 %v144
    %v215 = vpop.f32.mrb[0].mxu0
    %v216 = vadd.f32 %v140, %v215
    %v217 = vpop.f32.mrb[0].mxu0
    %218 = vmatprep.mubr.f32.mxu0 0.0
    %219 = vmatmul.mubr.f32.gmra.mrb[0].mxu0 %v147
    %v220 = vpop.f32.mrb[0].mxu0
    %v221 = vadd.f32 %v140, %v220
    %v222 = vpop.f32.mrb[0].mxu0
    %223 = vdwg.mxu0
    %vm224 = vcmask 261120
    %225 = vst.msk [vmem:[#allocation2] sm:$0xff] %vm224, %v216
    %226 = vst.msk [vmem:[#allocation2 + $0x8] sm:$0xff] %vm224, %v221
    %v227 = vld [vmem:[#allocation2] sm:$0xff]
    %v229 = vsel %vm224, 0.0, 0
    %231 = vmatprep.subr.mxu0 0.0
    %232 = vmatpush1.msra.mxu0 %v73
    %233 = vmatprep.subr.mxu0 0.0
    %234 = vmatpush1.msra.mxu0 %v74
    %235 = vmatprep.subr.mxu0 0.0
    %236 = vmatpush1.msra.mxu0 %v75
    %237 = vmatprep.subr.mxu0 0.0
    %238 = vmatpush1.msra.mxu0 %v76
    %239 = vmatprep.subr.mxu0 0.0
    %240 = vmatpush1.msra.mxu0 0.0
    %241 = vmatprep.subr.mxu0 0.0
    %242 = vmatpush1.msra.mxu0 0.0
    %243 = vmatprep.subr.mxu0 0.0
    %244 = vmatpush1.msra.mxu0 0.0
    %245 = vmatprep.subr.mxu0 0.0
    %246 = vmatpush1.msra.mxu0 0.0
    %247 = vmatprep.subr.mxu0 0.0
    %248 = vmatpush1.msra.mxu0 0.0
    %249 = vmatprep.subr.mxu0 0.0
    %250 = vmatpush1.msra.mxu0 0.0
    %251 = vmatprep.subr.mxu0 0.0
    %252 = vmatpush1.msra.mxu0 0.0
    %253 = vmatprep.subr.mxu0 0.0
    %254 = vmatpush1.msra.mxu0 0.0
    %255 = vmatprep.subr.mxu0 0.0
    %256 = vmatpush1.msra.mxu0 0.0
    %257 = vmatprep.subr.mxu0 0.0
    %258 = vmatpush1.msra.mxu0 0.0
    %259 = vmatprep.subr.mxu0 0.0
    %260 = vmatpush1.msra.mxu0 0.0
    %261 = vmatprep.subr.mxu0 0.0
    %262 = vmatpush1.msra.mxu0 0.0
    %263 = vmatprep.subr.mxu0 0.0
    %264 = vmatpush1.msra.mxu0 0.0
    %265 = vmatprep.subr.mxu0 0.0
    %266 = vmatpush1.msra.mxu0 0.0
    %267 = vmatprep.subr.mxu0 0.0
    %268 = vmatpush1.msra.mxu0 0.0
    %269 = vmatprep.subr.mxu0 0.0
    %270 = vmatpush1.msra.mxu0 0.0
    %271 = vmatprep.subr.mxu0 0.0
    %272 = vmatpush1.msra.mxu0 0.0
    %273 = vmatprep.subr.mxu0 0.0
    %274 = vmatpush1.msra.mxu0 0.0
    %275 = vmatprep.subr.mxu0 0.0
    %276 = vmatpush1.msra.mxu0 0.0
    %277 = vmatprep.subr.mxu0 0.0
    %278 = vmatpush1.msra.mxu0 0.0
    %279 = vmatprep.subr.mxu0 0.0
    %280 = vmatpush1.msra.mxu0 0.0
    %281 = vmatprep.subr.mxu0 0.0
    %282 = vmatpush1.msra.mxu0 0.0
    %283 = vmatprep.subr.mxu0 0.0
    %284 = vmatpush1.msra.mxu0 0.0
    %285 = vmatprep.subr.mxu0 0.0
    %286 = vmatpush1.msra.mxu0 0.0
    %287 = vmatprep.subr.mxu0 0.0
    %288 = vmatpush1.msra.mxu0 0.0
    %289 = vmatprep.subr.mxu0 0.0
    %290 = vmatpush1.msra.mxu0 0.0
    %291 = vmatprep.subr.mxu0 0.0
    %292 = vmatpush1.msra.mxu0 0.0
    %293 = vmatprep.subr.mxu0 0.0
    %294 = vmatpush1.msra.mxu0 0.0
    %295 = vmatprep.mubr.f32.mxu0 0.0
    %296 = vmatmul.mubr.f32.gmra.mrb[0].mxu0 %v229
    %v297 = vpop.f32.mrb[0].mxu0
    %v298 = vadd.f32 0.0, %v297
    %v299 = vpop.f32.mrb[0].mxu0
    %300 = vdwg.mxu0
    %v301 = vadd.f32 %v227, %v298
    %v302 = vtanh.pop %v301
    %303 = vst.msk [vmem:[#allocation3] sm:$0xff] %vm224, %v302
    %s304 = scalar_lea.vmem [#allocation2], 8
    %v305 = vld [vmem:[%s304] sm:$0xff]
    %v307 = vsel %vm224, %v302, 0
    %309 = vmatprep.subr.mxu0 0.0
    %310 = vmatpush1.msra.mxu0 %v73
    %311 = vmatprep.subr.mxu0 0.0
    %312 = vmatpush1.msra.mxu0 %v74
    %313 = vmatprep.subr.mxu0 0.0
    %314 = vmatpush1.msra.mxu0 %v75
    %315 = vmatprep.subr.mxu0 0.0
    %316 = vmatpush1.msra.mxu0 %v76
    %317 = vmatprep.subr.mxu0 0.0
    %318 = vmatpush1.msra.mxu0 0.0
    %319 = vmatprep.subr.mxu0 0.0
    %320 = vmatpush1.msra.mxu0 0.0
    %321 = vmatprep.subr.mxu0 0.0
    %322 = vmatpush1.msra.mxu0 0.0
    %323 = vmatprep.subr.mxu0 0.0
    %324 = vmatpush1.msra.mxu0 0.0
    %325 = vmatprep.subr.mxu0 0.0
    %326 = vmatpush1.msra.mxu0 0.0
    %327 = vmatprep.subr.mxu0 0.0
    %328 = vmatpush1.msra.mxu0 0.0
    %329 = vmatprep.subr.mxu0 0.0
    %330 = vmatpush1.msra.mxu0 0.0
    %331 = vmatprep.subr.mxu0 0.0
    %332 = vmatpush1.msra.mxu0 0.0
    %333 = vmatprep.subr.mxu0 0.0
    %334 = vmatpush1.msra.mxu0 0.0
    %335 = vmatprep.subr.mxu0 0.0
    %336 = vmatpush1.msra.mxu0 0.0
    %337 = vmatprep.subr.mxu0 0.0
    %338 = vmatpush1.msra.mxu0 0.0
    %339 = vmatprep.subr.mxu0 0.0
    %340 = vmatpush1.msra.mxu0 0.0
    %341 = vmatprep.subr.mxu0 0.0
    %342 = vmatpush1.msra.mxu0 0.0
    %343 = vmatprep.subr.mxu0 0.0
    %344 = vmatpush1.msra.mxu0 0.0
    %345 = vmatprep.subr.mxu0 0.0
    %346 = vmatpush1.msra.mxu0 0.0
    %347 = vmatprep.subr.mxu0 0.0
    %348 = vmatpush1.msra.mxu0 0.0
    %349 = vmatprep.subr.mxu0 0.0
    %350 = vmatpush1.msra.mxu0 0.0
    %351 = vmatprep.subr.mxu0 0.0
    %352 = vmatpush1.msra.mxu0 0.0
    %353 = vmatprep.subr.mxu0 0.0
    %354 = vmatpush1.msra.mxu0 0.0
    %355 = vmatprep.subr.mxu0 0.0
    %356 = vmatpush1.msra.mxu0 0.0
    %357 = vmatprep.subr.mxu0 0.0
    %358 = vmatpush1.msra.mxu0 0.0
    %359 = vmatprep.subr.mxu0 0.0
    %360 = vmatpush1.msra.mxu0 0.0
    %361 = vmatprep.subr.mxu0 0.0
    %362 = vmatpush1.msra.mxu0 0.0
    %363 = vmatprep.subr.mxu0 0.0
    %364 = vmatpush1.msra.mxu0 0.0
    %365 = vmatprep.subr.mxu0 0.0
    %366 = vmatpush1.msra.mxu0 0.0
    %367 = vmatprep.subr.mxu0 0.0
    %368 = vmatpush1.msra.mxu0 0.0
    %369 = vmatprep.subr.mxu0 0.0
    %370 = vmatpush1.msra.mxu0 0.0
    %371 = vmatprep.subr.mxu0 0.0
    %372 = vmatpush1.msra.mxu0 0.0
    %373 = vmatprep.mubr.f32.mxu0 0.0
    %374 = vmatmul.mubr.f32.gmra.mrb[0].mxu0 %v307
    %v375 = vpop.f32.mrb[0].mxu0
    %v376 = vadd.f32 0.0, %v375
    %v377 = vpop.f32.mrb[0].mxu0
    %378 = vdwg.mxu0
    %v379 = vadd.f32 %v305, %v376
    %v380 = vtanh.pop %v379
    %s381 = scalar_lea.vmem [#allocation3], 8
    %382 = vst.msk [vmem:[%s381] sm:$0xff] %vm224, %v380
    %v383 = vld [vmem:[%s4] sm:$0xff]
    %v384 = vld [vmem:[%s4 + $0x8] sm:$0xff]
    %v385 = vld [vmem:[%s4 + $0x10] sm:$0xff]
    %v386 = vld [vmem:[%s4 + $0x18] sm:$0xff]
    %v387 = vld [vmem:[#allocation6] sm:$0xff]
    %v388 = vld [vmem:[#allocation6 + $0x8] sm:$0xff]
    %v389 = vld [vmem:[#allocation6 + $0x10] sm:$0xff]
    %v390 = vld [vmem:[#allocation6 + $0x18] sm:$0xff]
    %v391 = vld [vmem:[%s6] sm:$0x1]
    %v392 = vld [vmem:[#allocation3] sm:$0xff]
    %v393 = vld [vmem:[#allocation3 + $0x8] sm:$0xff]
    %v395 = vlaneseq
    %v396 = vshrl.u32 %v395, 7
    %v397 = vsub.s32 0, %v396
    %v398 = vrot.slane %v391, %v397
    %v401 = vsel %vm224, %v392, 0
    %v404 = vsel %vm224, %v393, 0
    %406 = vmatprep.subr.mxu0 0.0
    %407 = vmatpush1.msra.mxu0 %v383
    %408 = vmatprep.subr.mxu0 0.0
    %409 = vmatpush1.msra.mxu0 %v384
    %410 = vmatprep.subr.mxu0 0.0
    %411 = vmatpush1.msra.mxu0 %v385
    %412 = vmatprep.subr.mxu0 0.0
    %413 = vmatpush1.msra.mxu0 %v386
    %414 = vmatprep.subr.mxu0 0.0
    %415 = vmatpush1.msra.mxu0 0.0
    %416 = vmatprep.subr.mxu0 0.0
    %417 = vmatpush1.msra.mxu0 0.0
    %418 = vmatprep.subr.mxu0 0.0
    %419 = vmatpush1.msra.mxu0 0.0
    %420 = vmatprep.subr.mxu0 0.0
    %421 = vmatpush1.msra.mxu0 0.0
    %422 = vmatprep.subr.mxu0 0.0
    %423 = vmatpush1.msra.mxu0 0.0
    %424 = vmatprep.subr.mxu0 0.0
    %425 = vmatpush1.msra.mxu0 0.0
    %426 = vmatprep.subr.mxu0 0.0
    %427 = vmatpush1.msra.mxu0 0.0
    %428 = vmatprep.subr.mxu0 0.0
    %429 = vmatpush1.msra.mxu0 0.0
    %430 = vmatprep.subr.mxu0 0.0
    %431 = vmatpush1.msra.mxu0 0.0
    %432 = vmatprep.subr.mxu0 0.0
    %433 = vmatpush1.msra.mxu0 0.0
    %434 = vmatprep.subr.mxu0 0.0
    %435 = vmatpush1.msra.mxu0 0.0
    %436 = vmatprep.subr.mxu0 0.0
    %437 = vmatpush1.msra.mxu0 0.0
    %438 = vmatprep.subr.mxu0 0.0
    %439 = vmatpush1.msra.mxu0 0.0
    %440 = vmatprep.subr.mxu0 0.0
    %441 = vmatpush1.msra.mxu0 0.0
    %442 = vmatprep.subr.mxu0 0.0
    %443 = vmatpush1.msra.mxu0 0.0
    %444 = vmatprep.subr.mxu0 0.0
    %445 = vmatpush1.msra.mxu0 0.0
    %446 = vmatprep.subr.mxu0 0.0
    %447 = vmatpush1.msra.mxu0 0.0
    %448 = vmatprep.subr.mxu0 0.0
    %449 = vmatpush1.msra.mxu0 0.0
    %450 = vmatprep.subr.mxu0 0.0
    %451 = vmatpush1.msra.mxu0 0.0
    %452 = vmatprep.subr.mxu0 0.0
    %453 = vmatpush1.msra.mxu0 0.0
    %454 = vmatprep.subr.mxu0 0.0
    %455 = vmatpush1.msra.mxu0 0.0
    %456 = vmatprep.subr.mxu0 0.0
    %457 = vmatpush1.msra.mxu0 0.0
    %458 = vmatprep.subr.mxu0 0.0
    %459 = vmatpush1.msra.mxu0 0.0
    %460 = vmatprep.subr.mxu0 0.0
    %461 = vmatpush1.msra.mxu0 0.0
    %462 = vmatprep.subr.mxu0 0.0
    %463 = vmatpush1.msra.mxu0 0.0
    %464 = vmatprep.subr.mxu0 0.0
    %465 = vmatpush1.msra.mxu0 0.0
    %466 = vmatprep.subr.mxu0 0.0
    %467 = vmatpush1.msra.mxu0 0.0
    %468 = vmatprep.subr.mxu0 0.0
    %469 = vmatpush1.msra.mxu0 0.0
    %470 = vmatprep.mubr.f32.mxu0 0.0
    %471 = vmatmul.mubr.f32.gmra.mrb[0].mxu0 %v401
    %v472 = vpop.f32.mrb[0].mxu0
    %v473 = vadd.f32 %v398, %v472
    %v474 = vpop.f32.mrb[0].mxu0
    %475 = vmatprep.mubr.f32.mxu0 0.0
    %476 = vmatmul.mubr.f32.gmra.mrb[0].mxu0 %v404
    %v477 = vpop.f32.mrb[0].mxu0
    %v478 = vadd.f32 %v398, %v477
    %v479 = vpop.f32.mrb[0].mxu0
    %480 = vdwg.mxu0
    %481 = vst.msk [vmem:[#allocation2] sm:$0xff] %vm224, %v473
    %482 = vst.msk [vmem:[#allocation2 + $0x8] sm:$0xff] %vm224, %v478
    %v483 = vld [vmem:[#allocation2] sm:$0xff]
    %484 = vmatprep.subr.mxu0 0.0
    %485 = vmatpush1.msra.mxu0 %v387
    %486 = vmatprep.subr.mxu0 0.0
    %487 = vmatpush1.msra.mxu0 %v388
    %488 = vmatprep.subr.mxu0 0.0
    %489 = vmatpush1.msra.mxu0 %v389
    %490 = vmatprep.subr.mxu0 0.0
    %491 = vmatpush1.msra.mxu0 %v390
    %492 = vmatprep.subr.mxu0 0.0
    %493 = vmatpush1.msra.mxu0 0.0
    %494 = vmatprep.subr.mxu0 0.0
    %495 = vmatpush1.msra.mxu0 0.0
    %496 = vmatprep.subr.mxu0 0.0
    %497 = vmatpush1.msra.mxu0 0.0
    %498 = vmatprep.subr.mxu0 0.0
    %499 = vmatpush1.msra.mxu0 0.0
    %500 = vmatprep.subr.mxu0 0.0
    %501 = vmatpush1.msra.mxu0 0.0
    %502 = vmatprep.subr.mxu0 0.0
    %503 = vmatpush1.msra.mxu0 0.0
    %504 = vmatprep.subr.mxu0 0.0
    %505 = vmatpush1.msra.mxu0 0.0
    %506 = vmatprep.subr.mxu0 0.0
    %507 = vmatpush1.msra.mxu0 0.0
    %508 = vmatprep.subr.mxu0 0.0
    %509 = vmatpush1.msra.mxu0 0.0
    %510 = vmatprep.subr.mxu0 0.0
    %511 = vmatpush1.msra.mxu0 0.0
    %512 = vmatprep.subr.mxu0 0.0
    %513 = vmatpush1.msra.mxu0 0.0
    %514 = vmatprep.subr.mxu0 0.0
    %515 = vmatpush1.msra.mxu0 0.0
    %516 = vmatprep.subr.mxu0 0.0
    %517 = vmatpush1.msra.mxu0 0.0
    %518 = vmatprep.subr.mxu0 0.0
    %519 = vmatpush1.msra.mxu0 0.0
    %520 = vmatprep.subr.mxu0 0.0
    %521 = vmatpush1.msra.mxu0 0.0
    %522 = vmatprep.subr.mxu0 0.0
    %523 = vmatpush1.msra.mxu0 0.0
    %524 = vmatprep.subr.mxu0 0.0
    %525 = vmatpush1.msra.mxu0 0.0
    %526 = vmatprep.subr.mxu0 0.0
    %527 = vmatpush1.msra.mxu0 0.0
    %528 = vmatprep.subr.mxu0 0.0
    %529 = vmatpush1.msra.mxu0 0.0
    %530 = vmatprep.subr.mxu0 0.0
    %531 = vmatpush1.msra.mxu0 0.0
    %532 = vmatprep.subr.mxu0 0.0
    %533 = vmatpush1.msra.mxu0 0.0
    %534 = vmatprep.subr.mxu0 0.0
    %535 = vmatpush1.msra.mxu0 0.0
    %536 = vmatprep.subr.mxu0 0.0
    %537 = vmatpush1.msra.mxu0 0.0
    %538 = vmatprep.subr.mxu0 0.0
    %539 = vmatpush1.msra.mxu0 0.0
    %540 = vmatprep.subr.mxu0 0.0
    %541 = vmatpush1.msra.mxu0 0.0
    %542 = vmatprep.subr.mxu0 0.0
    %543 = vmatpush1.msra.mxu0 0.0
    %544 = vmatprep.subr.mxu0 0.0
    %545 = vmatpush1.msra.mxu0 0.0
    %546 = vmatprep.subr.mxu0 0.0
    %547 = vmatpush1.msra.mxu0 0.0
    %548 = vmatprep.mubr.f32.mxu0 0.0
    %549 = vmatmul.mubr.f32.gmra.mrb[0].mxu0 %v229
    %v550 = vpop.f32.mrb[0].mxu0
    %v551 = vadd.f32 0.0, %v550
    %v552 = vpop.f32.mrb[0].mxu0
    %553 = vdwg.mxu0
    %v554 = vadd.f32 %v483, %v551
    %v555 = vtanh.pop %v554
    %v556 = vld [vmem:[%s304] sm:$0xff]
    %v558 = vsel %vm224, %v555, 0
    %560 = vmatprep.subr.mxu0 0.0
    %561 = vmatpush1.msra.mxu0 %v387
    %562 = vmatprep.subr.mxu0 0.0
    %563 = vmatpush1.msra.mxu0 %v388
    %564 = vmatprep.subr.mxu0 0.0
    %565 = vmatpush1.msra.mxu0 %v389
    %566 = vmatprep.subr.mxu0 0.0
    %567 = vmatpush1.msra.mxu0 %v390
    %568 = vmatprep.subr.mxu0 0.0
    %569 = vmatpush1.msra.mxu0 0.0
    %570 = vmatprep.subr.mxu0 0.0
    %571 = vmatpush1.msra.mxu0 0.0
    %572 = vmatprep.subr.mxu0 0.0
    %573 = vmatpush1.msra.mxu0 0.0
    %574 = vmatprep.subr.mxu0 0.0
    %575 = vmatpush1.msra.mxu0 0.0
    %576 = vmatprep.subr.mxu0 0.0
    %577 = vmatpush1.msra.mxu0 0.0
    %578 = vmatprep.subr.mxu0 0.0
    %579 = vmatpush1.msra.mxu0 0.0
    %580 = vmatprep.subr.mxu0 0.0
    %581 = vmatpush1.msra.mxu0 0.0
    %582 = vmatprep.subr.mxu0 0.0
    %583 = vmatpush1.msra.mxu0 0.0
    %584 = vmatprep.subr.mxu0 0.0
    %585 = vmatpush1.msra.mxu0 0.0
    %586 = vmatprep.subr.mxu0 0.0
    %587 = vmatpush1.msra.mxu0 0.0
    %588 = vmatprep.subr.mxu0 0.0
    %589 = vmatpush1.msra.mxu0 0.0
    %590 = vmatprep.subr.mxu0 0.0
    %591 = vmatpush1.msra.mxu0 0.0
    %592 = vmatprep.subr.mxu0 0.0
    %593 = vmatpush1.msra.mxu0 0.0
    %594 = vmatprep.subr.mxu0 0.0
    %595 = vmatpush1.msra.mxu0 0.0
    %596 = vmatprep.subr.mxu0 0.0
    %597 = vmatpush1.msra.mxu0 0.0
    %598 = vmatprep.subr.mxu0 0.0
    %599 = vmatpush1.msra.mxu0 0.0
    %600 = vmatprep.subr.mxu0 0.0
    %601 = vmatpush1.msra.mxu0 0.0
    %602 = vmatprep.subr.mxu0 0.0
    %603 = vmatpush1.msra.mxu0 0.0
    %604 = vmatprep.subr.mxu0 0.0
    %605 = vmatpush1.msra.mxu0 0.0
    %606 = vmatprep.subr.mxu0 0.0
    %607 = vmatpush1.msra.mxu0 0.0
    %608 = vmatprep.subr.mxu0 0.0
    %609 = vmatpush1.msra.mxu0 0.0
    %610 = vmatprep.subr.mxu0 0.0
    %611 = vmatpush1.msra.mxu0 0.0
    %612 = vmatprep.subr.mxu0 0.0
    %613 = vmatpush1.msra.mxu0 0.0
    %614 = vmatprep.subr.mxu0 0.0
    %615 = vmatpush1.msra.mxu0 0.0
    %616 = vmatprep.subr.mxu0 0.0
    %617 = vmatpush1.msra.mxu0 0.0
    %618 = vmatprep.subr.mxu0 0.0
    %619 = vmatpush1.msra.mxu0 0.0
    %620 = vmatprep.subr.mxu0 0.0
    %621 = vmatpush1.msra.mxu0 0.0
    %622 = vmatprep.subr.mxu0 0.0
    %623 = vmatpush1.msra.mxu0 0.0
    %624 = vmatprep.mubr.f32.mxu0 0.0
    %625 = vmatmul.mubr.f32.gmra.mrb[0].mxu0 %v558
    %v626 = vpop.f32.mrb[0].mxu0
    %v627 = vadd.f32 0.0, %v626
    %v628 = vpop.f32.mrb[0].mxu0
    %629 = vdwg.mxu0
    %v630 = vadd.f32 %v556, %v627
    %v631 = vtanh.pop %v630
    %v632 = vld [vmem:[%s7] sm:$0xff]
    %v633 = vld [vmem:[%s7 + $0x8] sm:$0xff]
    %v634 = vld [vmem:[%s7 + $0x10] sm:$0xff]
    %v635 = vld [vmem:[%s7 + $0x18] sm:$0xff]
    %v636 = vld [vmem:[#allocation8] sm:$0x1]
    %v638 = vlaneseq
    %v639 = vshrl.u32 %v638, 7
    %v640 = vsub.s32 0, %v639
    %v641 = vrot.slane %v636, %v640
    %v644 = vsel %vm224, %v631, 0
    %646 = vmatprep.subr.mxu0 0.0
    %647 = vmatpush1.msra.mxu0 %v632
    %648 = vmatprep.subr.mxu0 0.0
    %649 = vmatpush1.msra.mxu0 %v633
    %650 = vmatprep.subr.mxu0 0.0
    %651 = vmatpush1.msra.mxu0 %v634
    %652 = vmatprep.subr.mxu0 0.0
    %653 = vmatpush1.msra.mxu0 %v635
    %654 = vmatprep.subr.mxu0 0.0
    %655 = vmatpush1.msra.mxu0 0.0
    %656 = vmatprep.subr.mxu0 0.0
    %657 = vmatpush1.msra.mxu0 0.0
    %658 = vmatprep.subr.mxu0 0.0
    %659 = vmatpush1.msra.mxu0 0.0
    %660 = vmatprep.subr.mxu0 0.0
    %661 = vmatpush1.msra.mxu0 0.0
    %662 = vmatprep.subr.mxu0 0.0
    %663 = vmatpush1.msra.mxu0 0.0
    %664 = vmatprep.subr.mxu0 0.0
    %665 = vmatpush1.msra.mxu0 0.0
    %666 = vmatprep.subr.mxu0 0.0
    %667 = vmatpush1.msra.mxu0 0.0
    %668 = vmatprep.subr.mxu0 0.0
    %669 = vmatpush1.msra.mxu0 0.0
    %670 = vmatprep.subr.mxu0 0.0
    %671 = vmatpush1.msra.mxu0 0.0
    %672 = vmatprep.subr.mxu0 0.0
    %673 = vmatpush1.msra.mxu0 0.0
    %674 = vmatprep.subr.mxu0 0.0
    %675 = vmatpush1.msra.mxu0 0.0
    %676 = vmatprep.subr.mxu0 0.0
    %677 = vmatpush1.msra.mxu0 0.0
    %678 = vmatprep.subr.mxu0 0.0
    %679 = vmatpush1.msra.mxu0 0.0
    %680 = vmatprep.subr.mxu0 0.0
    %681 = vmatpush1.msra.mxu0 0.0
    %682 = vmatprep.subr.mxu0 0.0
    %683 = vmatpush1.msra.mxu0 0.0
    %684 = vmatprep.subr.mxu0 0.0
    %685 = vmatpush1.msra.mxu0 0.0
    %686 = vmatprep.subr.mxu0 0.0
    %687 = vmatpush1.msra.mxu0 0.0
    %688 = vmatprep.subr.mxu0 0.0
    %689 = vmatpush1.msra.mxu0 0.0
    %690 = vmatprep.subr.mxu0 0.0
    %691 = vmatpush1.msra.mxu0 0.0
    %692 = vmatprep.subr.mxu0 0.0
    %693 = vmatpush1.msra.mxu0 0.0
    %694 = vmatprep.subr.mxu0 0.0
    %695 = vmatpush1.msra.mxu0 0.0
    %696 = vmatprep.subr.mxu0 0.0
    %697 = vmatpush1.msra.mxu0 0.0
    %698 = vmatprep.subr.mxu0 0.0
    %699 = vmatpush1.msra.mxu0 0.0
    %700 = vmatprep.subr.mxu0 0.0
    %701 = vmatpush1.msra.mxu0 0.0
    %702 = vmatprep.subr.mxu0 0.0
    %703 = vmatpush1.msra.mxu0 0.0
    %704 = vmatprep.subr.mxu0 0.0
    %705 = vmatpush1.msra.mxu0 0.0
    %706 = vmatprep.subr.mxu0 0.0
    %707 = vmatpush1.msra.mxu0 0.0
    %708 = vmatprep.subr.mxu0 0.0
    %709 = vmatpush1.msra.mxu0 0.0
    %710 = vmatprep.mubr.f32.mxu0 0.0
    %711 = vmatmul.mubr.f32.gmra.mrb[0].mxu0 %v644
    %v712 = vpop.f32.mrb[0].mxu0
    %v713 = vadd.f32 %v641, %v712
    %v714 = vpop.f32.mrb[0].mxu0
    %715 = vdwg.mxu0
    %vm716 = vcmask 80896
    %v717 = vsel %vm716, %v713, -inf
    %718 = vmax.xlane.f32.xlu0 %v717
    %v719 = vpop.xlane.xlu0 %718
    %v720 = vsub.f32 %v713, %v719
    %v721 = vmul.f32 %v720, 1.442695
    %v722 = vpow.pop %v721
    %v723 = vsel %vm716, %v722, 0.0
    %724 = vadd.xlane.f32.xlu0 %v723
    %v725 = vpop.xlane.xlu0 %724
    %v726 = vlog2.pop %v725
    %v727 = vmul.f32 %v726, 0.6931472
    %v728 = vsub.f32 %v720, %v727
    %729 = vst.msk [vmem:[%s9] sm:$0xff] %vm716, %v728
    // Predicated region
    $region50: #{rnn_forward_pallas.1} parent=1 // pred_check
      _
    $region51: #{rnn_forward_pallas.1} parent=1 // pred_check_branch
      %731 = sbr.rel (0) target = $region53
    $region52: #{rnn_forward_pallas.1} parent=1 // pred_region
      _
    $region53: #{rnn_forward_pallas.1} parent=1 // pred_fallthru
      _
    // Predicated region
    $region54: #{rnn_forward_pallas.1} parent=1 // pred_check
      _
    $region55: #{rnn_forward_pallas.1} parent=1 // pred_check_branch
      %733 = sbr.rel (0) target = $region57
    $region56: #{rnn_forward_pallas.1} parent=1 // pred_region
      _
    $region57: #{rnn_forward_pallas.1} parent=1 // pred_fallthru
      _
    %734 = vsyncpa [#allocation5], 1
    %735 = vsyncpa [#allocation7], 1

</llo_original>
